<compile_context>
chip_gen: v6e
topology: v6e:2x2x1
jax: 0.10.0
libtpu: 0.0.40
codegen_flags: <defaults>
</compile_context>

<pallas_src>
import jax
import jax.numpy as jnp
from jax.experimental import pallas as pl
from jax.experimental.pallas import tpu as pltpu

_LANE = 128
_SUBLANE_FOR_ITEMSIZE = {4: 8, 2: 16}  # f32 / bf16-f16


def _hardsigmoid_kernel(x_ref, o_ref):
    # Elementwise Hardsigmoid on the current VMEM tile (pure VPU, no EUP).
    x = x_ref[...]
    one_sixth = jnp.asarray(1.0 / 6.0, dtype=x.dtype)
    half = jnp.asarray(0.5, dtype=x.dtype)
    o_ref[...] = jnp.clip(x * one_sixth + half, 0.0, 1.0)


def _hardsigmoid_ref(x: jax.Array) -> jax.Array:
    one_sixth = jnp.asarray(1.0 / 6.0, dtype=x.dtype)
    half = jnp.asarray(0.5, dtype=x.dtype)
    return jnp.clip(x * one_sixth + half, 0.0, 1.0).astype(x.dtype)


def _chip_config():
    """Per-generation tuning knobs (safe defaults if detection fails)."""
    try:
        kind = jax.devices()[0].device_kind.lower()
    except Exception:  # pragma: no cover
        kind = ""
    if "v7" in kind or "7x" in kind:
        # 64 MiB VMEM, 2 TCs, 3.2 TB/s: bigger tiles, >=4 even grid steps.
        return dict(tile_bytes=4 << 20, vmem_limit=48 << 20,
                    min_bypass=4 << 20, min_grid=4)
    if "v6" in kind:
        # 128 MiB VMEM, 1.4 TB/s: 4 MiB tiles fit the 32 MiB scoped default.
        return dict(tile_bytes=4 << 20, vmem_limit=None,
                    min_bypass=1 << 20, min_grid=2)
    # v5e / unknown: 16 MiB scoped-VMEM default -> keep 2 MiB tiles.
    return dict(tile_bytes=2 << 20, vmem_limit=None,
                min_bypass=1 << 20, min_grid=2)


def _pick_tile_rows(rows, cols, itemsize, sub, tile_bytes, min_grid):
    """Sublane-aligned row-tile targeting ~tile_bytes per block, >=min_grid steps."""
    if rows <= sub:
        return rows  # single full-extent block (allowed for any row count)
    bytes_per_row = cols * itemsize
    target_rows = max(sub, tile_bytes // bytes_per_row)
    tile_rows = (min(rows, target_rows) // sub) * sub
    tile_rows = max(sub, tile_rows)
    steps = -(-rows // tile_rows)
    # Guarantee enough grid steps for TC sharding + per-core pipelining.
    if steps < min_grid and rows >= min_grid * sub:
        tile_rows = max(sub, ((-(-rows // min_grid)) // sub) * sub)
        steps = -(-rows // tile_rows)
    # Best-effort even step count on dual-TC chips (load balance).
    if min_grid >= 4 and steps > 1 and steps % 2 == 1:
        cand = ((-(-rows // (steps + 1))) + sub - 1) // sub * sub
        if sub <= cand < tile_rows:
            tile_rows = cand
    return tile_rows


def _pallas_hardsigmoid_2d(x2d, tile_rows, *, alias, vmem_limit_bytes):
    """Hardsigmoid over a lane-dense 2-D slab, tiled along rows."""
    rows, cols = x2d.shape
    itemsize = jnp.dtype(x2d.dtype).itemsize
    grid = (pl.cdiv(rows, tile_rows),)
    cp_kwargs = dict(dimension_semantics=("parallel",))
    if vmem_limit_bytes is not None:
        cp_kwargs["vmem_limit_bytes"] = vmem_limit_bytes
    return pl.pallas_call(
        _hardsigmoid_kernel,
        out_shape=jax.ShapeDtypeStruct((rows, cols), x2d.dtype),
        grid=grid,
        in_specs=[pl.BlockSpec((tile_rows, cols), lambda i: (i, 0))],
        out_specs=pl.BlockSpec((tile_rows, cols), lambda i: (i, 0)),
        # Alias only when the operand is a kernel-local temporary; aliasing a
        # live caller array would force XLA to insert a defensive full copy.
        input_output_aliases=({0: 0} if alias else {}),
        compiler_params=pltpu.CompilerParams(**cp_kwargs),
        cost_estimate=pl.CostEstimate(
            flops=4 * rows * cols,
            transcendentals=0,
            bytes_accessed=2 * rows * cols * itemsize,
        ),
    )(x2d)


def trans_layer_rule1_hardsigmoid_forward(
    x: jax.Array,
    *,
    force_pallas: bool = False,
    min_pallas_bytes: int | None = None,
) -> jax.Array:
    """Equivalent of TransLayer_rule1_Hardsigmoid(nn.Hardsigmoid()).forward(x).

    Accepts any-rank input (e.g. NCHW); shape and dtype are preserved.
    Small tensors and unsupported dtypes bypass the kernel.
    """
    cfg = _chip_config()
    n = int(x.size)
    itemsize = jnp.dtype(x.dtype).itemsize
    sub = _SUBLANE_FOR_ITEMSIZE.get(itemsize)

    supported = (sub is not None) and jnp.issubdtype(x.dtype, jnp.floating)
    bypass_bytes = cfg["min_bypass"] if min_pallas_bytes is None else min_pallas_bytes
    if n == 0 or not supported or (not force_pallas and n * itemsize < bypass_bytes):
        return _hardsigmoid_ref(x)

    orig_shape = x.shape
    flat = x.reshape(-1)

    # ---- lane-dense column width: largest divisor of n (no padding copy) ----
    cols = None
    for c in (2048, 1024, 512, 256, _LANE):
        if n % c == 0:
            cols = c
            break

    if cols is not None:
        # Common path: pure reshape (bitcast), no extra HBM traffic, no alias.
        rows = n // cols
        tile_rows = _pick_tile_rows(rows, cols, itemsize, sub,
                                    cfg["tile_bytes"], cfg["min_grid"])
        y2d = _pallas_hardsigmoid_2d(
            flat.reshape(rows, cols), tile_rows,
            alias=False, vmem_limit_bytes=cfg["vmem_limit"])
        return y2d.reshape(orig_shape)

    # ---- genuinely ragged size: Pallas on the 128-aligned prefix only -------
    cols = _LANE
    n_main = (n // cols) * cols
    if n_main == 0:
        return _hardsigmoid_ref(x)  # too small to form a single lane row
    rows = n_main // cols
    tile_rows = _pick_tile_rows(rows, cols, itemsize, sub,
                                cfg["tile_bytes"], cfg["min_grid"])
    main = flat[:n_main].reshape(rows, cols)   # kernel-local temporary -> alias OK
    y_main = _pallas_hardsigmoid_2d(
        main, tile_rows, alias=True, vmem_limit_bytes=cfg["vmem_limit"])
    y_tail = _hardsigmoid_ref(flat[n_main:])   # tiny tail stays in plain jnp
    return jnp.concatenate([y_main.reshape(-1), y_tail]).reshape(orig_shape)


if __name__ == "__main__":
    key = jax.random.PRNGKey(0)
    k1, k2, k3, k4 = jax.random.split(key, 4)

    # 1) Small NCHW input consistent with a Hardsigmoid layer; force Pallas.
    x = jax.random.normal(k1, (2, 4, 16, 16), dtype=jnp.float32) * 4.0
    y = jax.block_until_ready(trans_layer_rule1_hardsigmoid_forward(x, force_pallas=True))
    ref = _hardsigmoid_ref(x)
    assert y.shape == x.shape and y.dtype == x.dtype
    assert jnp.allclose(y, ref, atol=1e-6), "Pallas Hardsigmoid mismatch vs reference"

    # 2) Larger input exercising a multi-step parallel grid (divisor cols path).
    x_big = jax.random.normal(k2, (4, 8, 64, 64), dtype=jnp.float32) * 4.0
    y_big = jax.block_until_ready(
        trans_layer_rule1_hardsigmoid_forward(x_big, force_pallas=True))
    assert jnp.allclose(y_big, _hardsigmoid_ref(x_big), atol=1e-6)

    # 3) Ragged size: Pallas on the aligned prefix, jnp on the tiny tail.
    x_odd = jax.random.normal(k3, (3, 7, 37), dtype=jnp.float32) * 4.0
    y_odd = jax.block_until_ready(
        trans_layer_rule1_hardsigmoid_forward(x_odd, force_pallas=True))
    assert jnp.allclose(y_odd, _hardsigmoid_ref(x_odd), atol=1e-6)

    # 4) bf16 path (sublane=16 tiling).
    x_bf = (jax.random.normal(k4, (4, 16, 32, 32), dtype=jnp.float32) * 4.0
            ).astype(jnp.bfloat16)
    y_bf = jax.block_until_ready(
        trans_layer_rule1_hardsigmoid_forward(x_bf, force_pallas=True))
    assert y_bf.dtype == x_bf.dtype
    assert jnp.allclose(y_bf.astype(jnp.float32),
                        _hardsigmoid_ref(x_bf).astype(jnp.float32), atol=1e-2)

    # 5) Small-input bypass path (no pallas_call) must agree too.
    y_bypass = jax.block_until_ready(trans_layer_rule1_hardsigmoid_forward(x))
    assert jnp.allclose(y_bypass, ref, atol=1e-6)

    print("KERNEL_OK")
</pallas_src>

<mosaic_0001>
module attributes {stable_mosaic.version = 11 : i64} {
  func.func @_hardsigmoid_kernel(%arg0: i32, %arg1: memref<1x2048xf32, #tpu.memory_space<vmem>>, %arg2: memref<1x2048xf32, #tpu.memory_space<vmem>>) attributes {dimension_semantics = [#tpu.dimension_semantics<parallel>], iteration_bounds = array<i64: 1>, scalar_prefetch = 0 : i64, scratch_operands = 0 : i64, tpu.core_type = #tpu.core_type<tc>, window_params = [{transform_indices = @transform_0, window_bounds = array<i64: 1, 2048>}, {transform_indices = @transform_1, window_bounds = array<i64: 1, 2048>}]} {
    %c0 = arith.constant 0 : index
    %c0_0 = arith.constant 0 : index
    %0 = vector.load %arg1[%c0, %c0_0] : memref<1x2048xf32, #tpu.memory_space<vmem>>, vector<1x2048xf32>
    %cst = arith.constant 0.166666672 : f32
    %1 = vector.broadcast %cst : f32 to vector<1x2048xf32>
    %2 = arith.mulf %0, %1 : vector<1x2048xf32>
    %cst_1 = arith.constant 5.000000e-01 : f32
    %3 = vector.broadcast %cst_1 : f32 to vector<1x2048xf32>
    %4 = arith.addf %2, %3 : vector<1x2048xf32>
    %cst_2 = arith.constant 0.000000e+00 : f32
    %cst_3 = arith.constant 1.000000e+00 : f32
    %5 = vector.broadcast %cst_2 : f32 to vector<1x2048xf32>
    %6 = arith.maximumf %5, %4 : vector<1x2048xf32>
    %7 = vector.broadcast %cst_3 : f32 to vector<1x2048xf32>
    %8 = arith.minimumf %7, %6 : vector<1x2048xf32>
    %c0_4 = arith.constant 0 : index
    %c0_5 = arith.constant 0 : index
    %9 = vector.load %arg2[%c0_4, %c0_5] : memref<1x2048xf32, #tpu.memory_space<vmem>>, vector<1x2048xf32>
    tpu.vector_store %arg2[%c0_4, %c0_5], %8 {strides = array<i32>} : memref<1x2048xf32, #tpu.memory_space<vmem>>, vector<1x2048xf32>,
    return
  }
  func.func @transform_0(%arg0: i32) -> (i32, i32) {
    %c0_i32 = arith.constant 0 : i32
    %c0_i32_0 = arith.constant 0 : i32
    return %arg0, %c0_i32 : i32, i32
  }
  func.func @transform_1(%arg0: i32) -> (i32, i32) {
    %c0_i32 = arith.constant 0 : i32
    %c0_i32_0 = arith.constant 0 : i32
    return %arg0, %c0_i32 : i32, i32
  }
}

</mosaic_0001>

<llo_original>
// kernel: tpu_custom_call.1
$region0: #{tpu_custom_call.1}
  #allocation0 [shape = 'u32[]', space=smem, size = 0x4, offset = 0x4, fixed_abs, tag = 'smem constant byte address 0x4 - core index']
  #allocation1 [shape = 'u32[144,128]{1,0:T(1,128)}', space=vmem, size = 0x12000, scoped, tag = 'internal scratch']
  %s0 = inlined_call_operand.hbm [shape: f32[1,2048], index: 0, kind: input, shape index: {}]
  %s1 = inlined_call_operand.hbm [shape: f32[1,2048], index: 1, kind: output, shape index: {}]
  %s2 = sld [smem:[#allocation0]]
  $region18: #{tpu_custom_call.1} parent=0
    _
  %s4 = ssub.s32 1, %s2
  %s5 = scalar_select 0, %s4, %s2
  $region1: #{tpu_custom_call.1} parent=0
    #allocation2 [shape = 'u8[8192]{0}', space=vmem, size = 0x2000, scoped, tag = 'input window, operand 0, single buffered']
    #allocation3 [shape = 's32[1]{0}', space=sflag, size = 0x4, scoped, tag = 'scoped memory for tpu_custom_call.1']
    #allocation4 [shape = 's32[1]{0}', space=sflag, size = 0x4, scoped, tag = 'scoped memory for tpu_custom_call.1']
    #allocation5 [shape = 'u8[8192]{0}', space=vmem, size = 0x2000, scoped, tag = 'output window, operand 0, single buffered']
    %6 = vsyncpa [#allocation3], 0
    %7 = vsyncpa [#allocation4], 0
    // Predicated region
    $region2: #{tpu_custom_call.1} parent=1 // pred_check
      _
    $region3: #{tpu_custom_call.1} parent=1 // pred_check_branch
      %9 = sbr.rel (0) target = $region5
    $region4: #{tpu_custom_call.1} parent=1 // pred_region
      %s11 = ssub.s32 256, 256
      %12 = vsyncadd [#allocation3], %s11
      %s14 = sshll.u32 [#allocation2], 4
      %s15 = int_to_ptr.vmem [resolvable:$true] %s14
      %17 = dma.hbm_to_vmem [thread:$0]  %s0, 256, %s15, [#allocation3]
    $region5: #{tpu_custom_call.1} parent=1 // pred_fallthru
      _
    // Predicated region
    $region6: #{tpu_custom_call.1} parent=1 // pred_check
      _
    $region7: #{tpu_custom_call.1} parent=1 // pred_check_branch
      %19 = sbr.rel (0) target = $region9
    $region8: #{tpu_custom_call.1} parent=1 // pred_region
      %20 = dma.done [#allocation3], 256
    $region9: #{tpu_custom_call.1} parent=1 // pred_fallthru
      _
    %v21 = vld [vmem:[#allocation2] sm:$0xff]
    %v22 = vld [vmem:[#allocation2 + $0x8] sm:$0xff]
    %v23 = vmul.f32 %v21, 0.16666667
    %v24 = vmul.f32 %v22, 0.16666667
    %v25 = vadd.f32 %v23, 0.5
    %v26 = vadd.f32 %v24, 0.5
    %v27 = vmax.f32 %v25, 0.0
    %v28 = vmax.f32 %v26, 0.0
    %v29 = vmin.f32 %v27, 1.0
    %v30 = vmin.f32 %v28, 1.0
    %31 = vst [vmem:[#allocation5] sm:$0xff] %v29
    %32 = vst [vmem:[#allocation5 + $0x8] sm:$0xff] %v30
    // Predicated region
    $region10: #{tpu_custom_call.1} parent=1 // pred_check
      _
    $region11: #{tpu_custom_call.1} parent=1 // pred_check_branch
      %34 = sbr.rel (0) target = $region13
    $region12: #{tpu_custom_call.1} parent=1 // pred_region
      %s36 = ssub.s32 256, 256
      %37 = vsyncadd [#allocation4], %s36
      %s39 = sshll.u32 [#allocation5], 4
      %s40 = int_to_ptr.vmem [resolvable:$true] %s39
      %42 = dma.vmem_to_hbm [thread:$0]  %s40, 256, %s1, [#allocation4]
    $region13: #{tpu_custom_call.1} parent=1 // pred_fallthru
      _
    // Predicated region
    $region14: #{tpu_custom_call.1} parent=1 // pred_check
      _
    $region15: #{tpu_custom_call.1} parent=1 // pred_check_branch
      %44 = sbr.rel (0) target = $region17
    $region16: #{tpu_custom_call.1} parent=1 // pred_region
      %45 = dma.done [#allocation4], 256
    $region17: #{tpu_custom_call.1} parent=1 // pred_fallthru
      _
    %46 = vsyncpa [#allocation3], 1
    %47 = vsyncpa [#allocation4], 1

</llo_original>
